<compile_context>
chip_gen: v5e
topology: v5e:2x2
jax: 0.10.0
libtpu: 0.0.40
codegen_flags: <defaults>
</compile_context>

<pallas_src>
import typing as tp

import jax
import jax.numpy as jnp
from jax import lax
from jax.experimental import pallas as pl
from jax.experimental.pallas import tpu as pltpu

_LANE = 128
_NSEM = 8                         # max in-flight row DMAs in the gather path
_ONEHOT_MAX_VOCAB = 512           # one-hot MXU path for vocab <= this
_VMEM_LIMIT = 48 * 1024 * 1024    # > 16/32 MiB scoped defaults, < 64 MiB (v7x)


def _round_up(x: int, m: int) -> int:
    return (x + m - 1) // m * m


def _pick_tile_t(t: int) -> int:
    # ~512 rows amortizes the ~0.35us/grid-step overhead and reaches ~85% of
    # the HBM roofline on v6e; with a single bf16 output per tile it also fits
    # v5e's smaller scoped VMEM and v7x's halved (64 MiB) physical VMEM.
    return min(512, _round_up(t, 8))


# --------------------------------------------------------------------------
# Pallas kernels
# --------------------------------------------------------------------------

def _linear_proj_kernel(x_ref, w_ref, b_ref, o_ref):
    """output_proj = nn.Linear(dim, output_dim); raw projection only.

    x_ref: [TILE_T, dim]   input dtype (cast to bf16 in-kernel for the MXU)
    w_ref: [dim, D_pad]    bf16, grid-resident
    b_ref: [1, D_pad]      f32,  grid-resident
    o_ref: [TILE_T, D_pad] (bf16 by default)
    """
    x = x_ref[...].astype(jnp.bfloat16)
    proj = jnp.dot(x, w_ref[...], preferred_element_type=jnp.float32)
    o_ref[...] = (proj + b_ref[...]).astype(o_ref.dtype)


def _embedding_onehot_kernel(ids_ref, tbl_ref, o_ref):
    """Small-vocab nn.Embedding as a one-hot MXU matmul (vectorized gather).

    ids_ref: [TILE_T, 1] int32 (VMEM, per-tile block)
    tbl_ref: [V_pad, D_pad] bf16, grid-resident
    o_ref:   [TILE_T, D_pad]
    Out-of-range ids yield an all-zero one-hot row (safe by construction).
    """
    tile_t = o_ref.shape[0]
    v_pad = tbl_ref.shape[0]
    onehot = (ids_ref[...] ==
              lax.broadcasted_iota(jnp.int32, (tile_t, v_pad), 1)
              ).astype(tbl_ref.dtype)
    o_ref[...] = jnp.dot(onehot, tbl_ref[...],
                         preferred_element_type=jnp.float32).astype(o_ref.dtype)


def _embedding_gather_kernel(ids_ref, tbl_hbm, o_ref, rows_ref, sems):
    """Large-vocab nn.Embedding: HBM-resident table + async row-DMA gather.

    ids_ref:  SMEM [B, T_pad] int32 (scalar prefetch)
    tbl_hbm:  HBM  [vocab, D_pad]   (memory_space=pl.ANY)
    o_ref:    [TILE_T, D_pad] output tile
    rows_ref: VMEM scratch [TILE_T, D_pad] (table dtype)
    sems:     DMA semaphores [_NSEM]

    At most _NSEM row DMAs are in flight (wave pattern).  Final write is one
    vectorized full-tile store (no per-row masked stores).
    """
    b = pl.program_id(0)
    ti = pl.program_id(1)
    tile_t = o_ref.shape[0]
    vocab = tbl_hbm.shape[0]
    base = ti * tile_t

    def row_copy(i, tok):
        return pltpu.make_async_copy(
            tbl_hbm.at[pl.ds(tok, 1), :],
            rows_ref.at[pl.ds(i, 1), :],
            sems.at[i & (_NSEM - 1)])

    def start(i):
        tok = ids_ref[b, base + i]
        tok = jnp.clip(tok, 0, vocab - 1)   # no runtime OOB check on TPU DMAs
        row_copy(i, tok).start()

    # Prime the wave (static unroll, <= _NSEM starts).
    for i in range(min(_NSEM, tile_t)):
        start(i)

    # Steady state: wait for row i, then issue row i + _NSEM.
    def steady(i, carry):
        row_copy(i, 0).wait()

        @pl.when(i + _NSEM < tile_t)
        def _():
            start(i + _NSEM)

        return carry

    lax.fori_loop(0, tile_t, steady, 0)
    o_ref[...] = rows_ref[...].astype(o_ref.dtype)


# --------------------------------------------------------------------------
# pallas_call wrappers
# --------------------------------------------------------------------------

def linear_condition(x, weight, bias, *, tile_t=None, out_dtype=jnp.bfloat16):
    """x: [B, T, dim], weight: [dim, D], bias: [D] -> raw projection [B, T, D]."""
    b_sz, t, dim = x.shape
    d_out = weight.shape[1]
    d_pad = _round_up(d_out, _LANE)
    if tile_t is None:
        tile_t = _pick_tile_t(t)
    t_pad = _round_up(t, tile_t)

    xp = x if t_pad == t else jnp.pad(x, ((0, 0), (0, t_pad - t), (0, 0)))
    wb = weight.astype(jnp.bfloat16)
    bb = bias.astype(jnp.float32).reshape(1, d_out)
    if d_pad != d_out:
        wb = jnp.pad(wb, ((0, 0), (0, d_pad - d_out)))
        bb = jnp.pad(bb, ((0, 0), (0, d_pad - d_out)))

    grid = (b_sz, t_pad // tile_t)
    out = pl.pallas_call(
        _linear_proj_kernel,
        out_shape=jax.ShapeDtypeStruct((b_sz, t_pad, d_pad), out_dtype),
        grid_spec=pltpu.PrefetchScalarGridSpec(
            num_scalar_prefetch=0,
            grid=grid,
            in_specs=[
                pl.BlockSpec((None, tile_t, dim), lambda b, ti: (b, ti, 0)),
                pl.BlockSpec((dim, d_pad), lambda b, ti: (0, 0)),
                pl.BlockSpec((1, d_pad), lambda b, ti: (0, 0)),
            ],
            out_specs=pl.BlockSpec((None, tile_t, d_pad),
                                   lambda b, ti: (b, ti, 0)),
        ),
        compiler_params=pltpu.CompilerParams(
            dimension_semantics=("parallel", "parallel"),
            vmem_limit_bytes=_VMEM_LIMIT),
    )(xp, wb, bb)

    if t_pad != t or d_pad != d_out:
        # TODO(synk): for unaligned D/T rely on XLA fusing this slice into the
        # consumer; demo shapes are lane-aligned so this branch is not taken.
        out = out[:, :t, :d_out]
    return out


def embedding_condition(ids, table, *, tile_t=None, out_dtype=jnp.bfloat16):
    """ids: [B, T] int, table: [vocab, D] -> raw embeddings [B, T, D]."""
    b_sz, t = ids.shape
    vocab, d_out = table.shape
    d_pad = _round_up(d_out, _LANE)
    if tile_t is None:
        tile_t = _pick_tile_t(t)
    t_pad = _round_up(t, tile_t)

    ids_p = ids.astype(jnp.int32)
    if t_pad != t:
        ids_p = jnp.pad(ids_p, ((0, 0), (0, t_pad - t)))   # pad with padding_idx 0
    grid = (b_sz, t_pad // tile_t)

    if vocab <= _ONEHOT_MAX_VOCAB:
        # Small vocab: table + one-hot fit VMEM comfortably -> MXU matmul.
        v_pad = _round_up(vocab, 8)
        tbl = table.astype(jnp.bfloat16)
        if (v_pad, d_pad) != (vocab, d_out):
            tbl = jnp.pad(tbl, ((0, v_pad - vocab), (0, d_pad - d_out)))
        ids3 = ids_p.reshape(b_sz, t_pad, 1)
        out = pl.pallas_call(
            _embedding_onehot_kernel,
            out_shape=jax.ShapeDtypeStruct((b_sz, t_pad, d_pad), out_dtype),
            grid_spec=pltpu.PrefetchScalarGridSpec(
                num_scalar_prefetch=0,
                grid=grid,
                in_specs=[
                    pl.BlockSpec((None, tile_t, 1), lambda b, ti: (b, ti, 0)),
                    pl.BlockSpec((v_pad, d_pad), lambda b, ti: (0, 0)),
                ],
                out_specs=pl.BlockSpec((None, tile_t, d_pad),
                                       lambda b, ti: (b, ti, 0)),
            ),
            compiler_params=pltpu.CompilerParams(
                dimension_semantics=("parallel", "parallel"),
                vmem_limit_bytes=_VMEM_LIMIT),
        )(ids3, tbl)
    else:
        # Large vocab: keep the table in HBM, DMA-gather only the needed rows.
        tbl = table
        if d_pad != d_out:
            tbl = jnp.pad(tbl, ((0, 0), (0, d_pad - d_out)))
        out = pl.pallas_call(
            _embedding_gather_kernel,
            out_shape=jax.ShapeDtypeStruct((b_sz, t_pad, d_pad), out_dtype),
            grid_spec=pltpu.PrefetchScalarGridSpec(
                num_scalar_prefetch=1,
                grid=grid,
                in_specs=[pl.BlockSpec(memory_space=pl.ANY)],
                out_specs=pl.BlockSpec((None, tile_t, d_pad),
                                       lambda b, ti, ids_pref: (b, ti, 0)),
                scratch_shapes=[pltpu.VMEM((tile_t, d_pad), tbl.dtype),
                                pltpu.SemaphoreType.DMA((_NSEM,))],
            ),
            compiler_params=pltpu.CompilerParams(
                dimension_semantics=("parallel", "parallel"),
                vmem_limit_bytes=_VMEM_LIMIT),
        )(ids_p, tbl)

    if t_pad != t or d_pad != d_out:
        out = out[:, :t, :d_out]
    return out


# --------------------------------------------------------------------------
# Conditioner modules (parameter containers + forward glue)
# --------------------------------------------------------------------------

class TextConditioner:
    """BaseConditioner with input_token=False -> output_proj = nn.Linear."""

    def __init__(self, key, dim: int, output_dim: int):
        self.dim = dim
        self.output_dim = output_dim
        kw, kb = jax.random.split(key)
        bound = 1.0 / (dim ** 0.5)          # torch nn.Linear default init
        self.weight = jax.random.uniform(kw, (dim, output_dim),
                                         jnp.float32, -bound, bound)
        self.bias = jax.random.uniform(kb, (output_dim,),
                                       jnp.float32, -bound, bound)

    def tokenize(self, batch):
        # synthetic: batch is already (hidden_states [B,T,dim], lengths [B])
        return batch

    def __call__(self, inputs):
        x, lengths = inputs
        _, t, dim = x.shape
        assert dim == self.dim
        cond2 = linear_condition(x, self.weight, self.bias)
        mask = (jnp.arange(t)[None, :] < lengths[:, None]).astype(jnp.float32)
        cond1 = cond2 * mask[..., None].astype(cond2.dtype)
        return cond1, cond2, mask


class TokenConditioner:
    """BaseConditioner with input_token=True -> output_proj = nn.Embedding."""

    def __init__(self, key, dim: int, output_dim: int, padding_idx: int = 0):
        self.dim = dim                      # vocab size
        self.output_dim = output_dim
        self.padding_idx = padding_idx
        table = jax.random.normal(key, (dim, output_dim), jnp.float32)
        # nn.Embedding zeroes the padding_idx row at init
        self.table = table.at[padding_idx].set(0.0)

    def tokenize(self, batch):
        # synthetic: batch is already (token_ids [B,T] int32, lengths [B])
        return batch

    def __call__(self, inputs):
        ids, lengths = inputs
        _, t = ids.shape
        cond2 = embedding_condition(ids, self.table)
        mask = (jnp.arange(t)[None, :] < lengths[:, None]).astype(jnp.float32)
        cond1 = cond2 * mask[..., None].astype(cond2.dtype)
        return cond1, cond2, mask


class ConditionerProvider:
    """JAX/Pallas port of codeclm ConditionerProvider.forward."""

    def __init__(self, conditioners: tp.Dict[str, tp.Any]):
        self.conditioners = conditioners

    def tokenize(self, inputs: tp.Dict[str, tp.Any]) -> tp.Dict[str, tp.Any]:
        # TODO(synk): _collate_text/_collate_audios operate on Python-side
        # ConditioningAttributes/str/AudioCondition objects (no array compute);
        # here tokenize just forwards per-attribute batches to each conditioner.
        assert set(inputs.keys()).issubset(set(self.conditioners.keys()))
        return {attr: self.conditioners[attr].tokenize(batch)
                for attr, batch in inputs.items()}

    def forward(self, tokenized: tp.Dict[str, tp.Any], structure_dur=None):
        output = {}
        for attribute, inputs in tokenized.items():
            # structure_dur path is a passthrough kwarg; conditioners here
            # do not consume it.
            condition1, condition2, mask = self.conditioners[attribute](inputs)
            output[attribute] = (condition1, condition2, mask)
        return output

    __call__ = forward


# --------------------------------------------------------------------------
# Demo / smoke test
# --------------------------------------------------------------------------

if __name__ == "__main__":
    key = jax.random.PRNGKey(0)
    k_desc, k_genre, k_spk, k_x, k_ids1, k_ids2 = jax.random.split(key, 6)

    B, T = 2, 8
    DIM, D_OUT = 32, 128      # hidden dim / output dim (lane-aligned, no pad)
    VOCAB_SMALL = 16          # genre LUT   -> one-hot MXU path
    VOCAB_LARGE = 1000        # speaker LUT -> HBM-resident DMA gather path

    provider = ConditionerProvider({
        "description": TextConditioner(k_desc, dim=DIM, output_dim=D_OUT),
        "genre": TokenConditioner(k_genre, dim=VOCAB_SMALL, output_dim=D_OUT),
        "speaker": TokenConditioner(k_spk, dim=VOCAB_LARGE, output_dim=D_OUT),
    })

    # "description": pre-encoded hidden states [B, T, DIM] + lengths
    desc_hidden = jax.random.normal(k_x, (B, T, DIM), jnp.float32)
    desc_lengths = jnp.array([8, 5], dtype=jnp.int32)

    # "genre"/"speaker": token ids [B, T] (0 is padding) + lengths
    genre_lengths = jnp.array([8, 3], dtype=jnp.int32)
    genre_ids = jax.random.randint(k_ids1, (B, T), 1, VOCAB_SMALL, dtype=jnp.int32)
    genre_ids = jnp.where(jnp.arange(T)[None, :] < genre_lengths[:, None],
                          genre_ids, 0)

    spk_lengths = jnp.array([6, 8], dtype=jnp.int32)
    spk_ids = jax.random.randint(k_ids2, (B, T), 1, VOCAB_LARGE, dtype=jnp.int32)
    spk_ids = jnp.where(jnp.arange(T)[None, :] < spk_lengths[:, None],
                        spk_ids, 0)

    tokenized = provider.tokenize({
        "description": (desc_hidden, desc_lengths),
        "genre": (genre_ids, genre_lengths),
        "speaker": (spk_ids, spk_lengths),
    })
    out = provider(tokenized)
    jax.block_until_ready(out)

    # --- correctness checks vs. plain JAX references ------------------------
    f32 = jnp.float32

    desc_cond = provider.conditioners["description"]
    d_c1, d_c2, d_m = out["description"]
    ref_proj = jnp.dot(
        desc_hidden.astype(jnp.bfloat16).astype(f32).reshape(-1, DIM),
        desc_cond.weight.astype(jnp.bfloat16).astype(f32),
        precision=lax.Precision.HIGHEST).reshape(B, T, D_OUT)
    ref_proj = ref_proj + desc_cond.bias[None, None, :]
    assert d_c2.shape == (B, T, D_OUT) and d_m.shape == (B, T)
    assert jnp.allclose(d_c2.astype(f32), ref_proj, atol=2e-2, rtol=2e-2)
    assert jnp.allclose(d_c1.astype(f32), ref_proj * d_m[..., None],
                        atol=2e-2, rtol=2e-2)

    for attr, ids, lens in (("genre", genre_ids, genre_lengths),
                            ("speaker", spk_ids, spk_lengths)):
        cond = provider.conditioners[attr]
        c1, c2, m = out[attr]
        ref_emb = cond.table.astype(jnp.bfloat16).astype(f32)[ids]
        assert c2.shape == (B, T, D_OUT) and m.shape == (B, T)
        assert jnp.allclose(c2.astype(f32), ref_emb, atol=1e-6)
        assert jnp.allclose(c1.astype(f32), ref_emb * m[..., None], atol=1e-6)

    print("KERNEL_OK")
</pallas_src>

<mosaic_0001>
module attributes {stable_mosaic.version = 11 : i64} {
  func.func @_linear_proj_kernel(%arg0: i32, %arg1: i32, %arg2: memref<1x8x32xf32, #tpu.memory_space<vmem>>, %arg3: memref<32x128xbf16, #tpu.memory_space<vmem>>, %arg4: memref<1x128xf32, #tpu.memory_space<vmem>>, %arg5: memref<1x8x128xbf16, #tpu.memory_space<vmem>>) attributes {dimension_semantics = [#tpu.dimension_semantics<parallel>, #tpu.dimension_semantics<parallel>], iteration_bounds = array<i64: 2, 1>, scalar_prefetch = 0 : i64, scratch_operands = 0 : i64, tpu.core_type = #tpu.core_type<tc>, window_params = [{transform_indices = @transform_0, window_bounds = array<i64: 1, 8, 32>}, {pipeline_mode = #tpu.pipeline_mode<synchronous>, transform_indices = @transform_1, window_bounds = array<i64: 32, 128>}, {pipeline_mode = #tpu.pipeline_mode<synchronous>, transform_indices = @transform_2, window_bounds = array<i64: 1, 128>}, {transform_indices = @transform_3, window_bounds = array<i64: 1, 8, 128>}]} {
    %c0 = arith.constant 0 : index
    %c0_0 = arith.constant 0 : index
    %c0_1 = arith.constant 0 : index
    %0 = vector.load %arg2[%c0, %c0_0, %c0_1] : memref<1x8x32xf32, #tpu.memory_space<vmem>>, vector<1x8x32xf32>
    %1 = vector.shape_cast %0 : vector<1x8x32xf32> to vector<8x32xf32>
    %2 = arith.truncf %1 : vector<8x32xf32> to vector<8x32xbf16>
    %c0_2 = arith.constant 0 : index
    %c0_3 = arith.constant 0 : index
    %3 = vector.load %arg3[%c0_2, %c0_3] : memref<32x128xbf16, #tpu.memory_space<vmem>>, vector<32x128xbf16>
    %cst = arith.constant dense<0.000000e+00> : vector<8x128xf32>
    %4 = tpu.matmul %2, %3, %cst {dimension_numbers = #tpu.dot_dimension_numbers<[1], [0], [0], [1], [0, 0, 1, 1], [], []>} : vector<8x32xbf16>, vector<32x128xbf16>, vector<8x128xf32> -> vector<8x128xf32>
    %c0_4 = arith.constant 0 : index
    %c0_5 = arith.constant 0 : index
    %5 = vector.load %arg4[%c0_4, %c0_5] : memref<1x128xf32, #tpu.memory_space<vmem>>, vector<1x128xf32>
    %6 = vector.broadcast %5 : vector<1x128xf32> to vector<8x128xf32>
    %7 = arith.addf %4, %6 : vector<8x128xf32>
    %8 = arith.truncf %7 : vector<8x128xf32> to vector<8x128xbf16>
    %c0_6 = arith.constant 0 : index
    %c0_7 = arith.constant 0 : index
    %c0_8 = arith.constant 0 : index
    %9 = vector.load %arg5[%c0_6, %c0_7, %c0_8] : memref<1x8x128xbf16, #tpu.memory_space<vmem>>, vector<1x8x128xbf16>
    %10 = vector.shape_cast %9 : vector<1x8x128xbf16> to vector<8x128xbf16>
    %11 = vector.shape_cast %8 : vector<8x128xbf16> to vector<1x8x128xbf16>
    tpu.vector_store %arg5[%c0_6, %c0_7, %c0_8], %11 {strides = array<i32>} : memref<1x8x128xbf16, #tpu.memory_space<vmem>>, vector<1x8x128xbf16>,
    return
  }
  func.func @transform_0(%arg0: i32, %arg1: i32) -> (i32, i32, i32) {
    %c0_i32 = arith.constant 0 : i32
    %c0_i32_0 = arith.constant 0 : i32
    return %arg0, %arg1, %c0_i32 : i32, i32, i32
  }
  func.func @transform_1(%arg0: i32, %arg1: i32) -> (i32, i32) {
    %c0_i32 = arith.constant 0 : i32
    %c0_i32_0 = arith.constant 0 : i32
    %c0_i32_1 = arith.constant 0 : i32
    return %c0_i32, %c0_i32_0 : i32, i32
  }
  func.func @transform_2(%arg0: i32, %arg1: i32) -> (i32, i32) {
    %c0_i32 = arith.constant 0 : i32
    %c0_i32_0 = arith.constant 0 : i32
    %c0_i32_1 = arith.constant 0 : i32
    return %c0_i32, %c0_i32_0 : i32, i32
  }
  func.func @transform_3(%arg0: i32, %arg1: i32) -> (i32, i32, i32) {
    %c0_i32 = arith.constant 0 : i32
    %c0_i32_0 = arith.constant 0 : i32
    return %arg0, %arg1, %c0_i32 : i32, i32, i32
  }
}

</mosaic_0001>

<llo_original>
// kernel: tpu_custom_call.1
$region0: #{tpu_custom_call.1}
  #allocation0 [shape = 'u32[]', space=smem, size = 0x4, offset = 0x4, fixed_abs, tag = 'smem constant byte address 0x4 - core index']
  #allocation1 [shape = 'u32[72,128]{1,0:T(1,128)}', space=vmem, size = 0x9000, scoped, tag = 'internal scratch']
  %s0 = inlined_call_operand.hbm [shape: f32[2,8,32], index: 0, kind: input, shape index: {}]
  %s1 = inlined_call_operand.hbm [shape: bf16[32,128], index: 1, kind: input, shape index: {}]
  %s2 = inlined_call_operand.vmem [shape: f32[1,128], index: 2, kind: input, shape index: {}]
  %s3 = inlined_call_operand.hbm [shape: bf16[2,8,128], index: 3, kind: output, shape index: {}]
  %s4 = sld [smem:[#allocation0]]
  $region53: #{tpu_custom_call.1} parent=0
    _
  %s6 = ssub.s32 1, %s4
  %s7 = scalar_select 0, %s6, %s4
  $region1: #{tpu_custom_call.1} parent=0
    #allocation2 [shape = 'u8[8192]{0}', space=vmem, size = 0x2000, scoped, tag = 'input window, operand 0']
    #allocation3 [shape = 's32[2]{0}', space=sflag, size = 0x8, scoped, tag = 'scoped memory for tpu_custom_call.1']
    #allocation4 [shape = 's32[2]{0}', space=sflag, size = 0x8, scoped, tag = 'scoped memory for tpu_custom_call.1']
    #allocation5 [shape = 'u8[8192]{0}', space=vmem, size = 0x2000, scoped, tag = 'input window, operand 1, single buffered']
    #allocation6 [shape = 's32[1]{0}', space=sflag, size = 0x4, scoped, tag = 'scoped memory for tpu_custom_call.1']
    #allocation7 [shape = 'u8[4096]{0}', space=vmem, size = 0x1000, scoped, tag = 'output window, operand 0']
    %8 = vsyncpa [#allocation3], 0
    %s9 = scalar_lea.sflag [#allocation3], 1
    %10 = vsyncpa %s9, 0
    %11 = vsyncpa [#allocation6], 0
    %12 = vsyncpa [#allocation4], 0
    %s13 = scalar_lea.sflag [#allocation4], 1
    %14 = vsyncpa %s13, 0
    loop: start=0, step=1, limit=4
    $region2: #{tpu_custom_call.1} parent=1 // loop_pre_header
      _
    $region3: #{tpu_custom_call.1} parent=1 // loop_header
      %s16 = sphi 0, %s20
      %p17 = scmp.ge.s32.totalorder %s16, 4
      %s23 = sphi 0, %s35
      %s24 = sphi 0, %s31
      %s25 = sphi 0, %s23
      %s26 = sphi 0, %s24
      %s27 = sphi 0, %s25
      %s28 = sphi 0, %s26
      %s40 = sphi 0, %s42
      %s43 = sphi 0, %s40
      %s44 = sphi 0, %s43
      %s60 = sphi 0, %s44
      %s64 = sphi 0, %s64
      %s66 = sphi 0, %s64
      %s67 = sphi 0, %s66
      %s81 = sphi 0, %s67
      %s85 = sphi 0, %s85
      %s87 = sphi 0, %s85
      %s88 = sphi 0, %s87
      %s102 = sphi 0, %s88
      %s110 = sphi 0, %s112
      %s113 = sphi 0, %s110
      %s114 = sphi 0, %s113
      %s130 = sphi 0, %s114
    $region4: #{tpu_custom_call.1} parent=1 // loop_header_branch
      %19 = sbr.rel (%p17) target = $region8
    $region5: #{tpu_custom_call.1} parent=1 // loop_body
      %s21 = ssub.s32 %s16, 1
      %s22 = ssub.s32 %s16, 2
      %s29 = sadd.s32 1, %s24
      %p30 = scmp.ge.s32.totalorder %s29, 1
      %s31 = scalar_select %p30, 0, %s29
      %s32 = sadd.s32 1, %s23
      %s33 = scalar_select %p30, %s32, %s23
      %p34 = scmp.ge.s32.totalorder %s33, 2
      %s35 = scalar_select %p34, 0, %s33
      %s36 = ssub.s32 %s23, %s35
      %s37 = ssub.s32 %s24, %s31
      %s38 = sor.u32 %s36, %s37
      %p39 = scmp.eq.s32.totalorder %s38, 0
      %s41 = sadd.s32 %s40, 1
      %s42 = scalar_select %p39, %s40, %s41
      %p45 = pneg %p39
      %p46 = scmp.eq.s32.totalorder %s16, 1
      %p47 = por %p45, %p46
      %p48 = scmp.ne.s32.totalorder %s40, %s43
      %p49 = scmp.eq.s32.totalorder %s16, 0
      %p50 = por %p48, %p49
      %p51 = scmp.ne.s32.totalorder %s40, %s43
      %p52 = scmp.eq.s32.totalorder %s21, 1
      %p53 = por %p51, %p52
      %p54 = scmp.ne.s32.totalorder %s43, %s44
      %p55 = scmp.eq.s32.totalorder %s21, 0
      %p56 = por %p54, %p55
      %p57 = scmp.ne.s32.totalorder %s43, %s44
      %p58 = scmp.eq.s32.totalorder %s22, 1
      %p59 = por %p57, %p58
      %p61 = scmp.ne.s32.totalorder %s44, %s60
      %p62 = scmp.eq.s32.totalorder %s22, 0
      %p63 = por %p61, %p62
      %s65 = sadd.s32 %s64, 1
      %p68 = scmp.eq.s32.totalorder %s16, 1
      %p69 = scmp.ne.s32.totalorder %s64, %s66
      %p70 = scmp.eq.s32.totalorder %s16, 0
      %p71 = por %p69, %p70
      %p72 = scmp.ne.s32.totalorder %s64, %s66
      %p73 = scmp.eq.s32.totalorder %s21, 1
      %p74 = por %p72, %p73
      %p75 = scmp.ne.s32.totalorder %s66, %s67
      %p76 = scmp.eq.s32.totalorder %s21, 0
      %p77 = por %p75, %p76
      %p78 = scmp.ne.s32.totalorder %s66, %s67
      %p79 = scmp.eq.s32.totalorder %s22, 1
      %p80 = por %p78, %p79
      %p82 = scmp.ne.s32.totalorder %s67, %s81
      %p83 = scmp.eq.s32.totalorder %s22, 0
      %p84 = por %p82, %p83
      %s86 = sadd.s32 %s85, 1
      %p89 = scmp.eq.s32.totalorder %s16, 1
      %p90 = scmp.ne.s32.totalorder %s85, %s87
      %p91 = scmp.eq.s32.totalorder %s16, 0
      %p92 = por %p90, %p91
      %p93 = scmp.ne.s32.totalorder %s85, %s87
      %p94 = scmp.eq.s32.totalorder %s21, 1
      %p95 = por %p93, %p94
      %p96 = scmp.ne.s32.totalorder %s87, %s88
      %p97 = scmp.eq.s32.totalorder %s21, 0
      %p98 = por %p96, %p97
      %p99 = scmp.ne.s32.totalorder %s87, %s88
      %p100 = scmp.eq.s32.totalorder %s22, 1
      %p101 = por %p99, %p100
      %p103 = scmp.ne.s32.totalorder %s88, %s102
      %p104 = scmp.eq.s32.totalorder %s22, 0
      %p105 = por %p103, %p104
      %s106 = ssub.s32 %s23, %s35
      %s107 = ssub.s32 %s24, %s31
      %s108 = sor.u32 %s106, %s107
      %p109 = scmp.eq.s32.totalorder %s108, 0
      %s111 = sadd.s32 %s110, 1
      %s112 = scalar_select %p109, %s110, %s111
      %p115 = pneg %p109
      %p116 = scmp.eq.s32.totalorder %s16, 1
      %p117 = por %p115, %p116
      %p118 = scmp.ne.s32.totalorder %s110, %s113
      %p119 = scmp.eq.s32.totalorder %s16, 0
      %p120 = por %p118, %p119
      %p121 = scmp.ne.s32.totalorder %s110, %s113
      %p122 = scmp.eq.s32.totalorder %s21, 1
      %p123 = por %p121, %p122
      %p124 = scmp.ne.s32.totalorder %s113, %s114
      %p125 = scmp.eq.s32.totalorder %s21, 0
      %p126 = por %p124, %p125
      %p127 = scmp.ne.s32.totalorder %s113, %s114
      %p128 = scmp.eq.s32.totalorder %s22, 1
      %p129 = por %p127, %p128
      %p131 = scmp.ne.s32.totalorder %s114, %s130
      %p132 = scmp.eq.s32.totalorder %s22, 0
      %p133 = por %p131, %p132
      %p134 = scmp.le.s32.totalorder 1, %s16
      %p135 = scmp.lt.s32.totalorder %s16, 3
      %p136 = pnand %p134, %p135
      %p137 = pneg %p136
      // Predicated region
      $region9: #{tpu_custom_call.1} parent=5 // pred_check
        _
      $region10: #{tpu_custom_call.1} parent=5 // pred_check_branch
        %139 = sbr.rel (%p136) target = $region12
      $region11: #{tpu_custom_call.1} parent=5 // pred_region
        %s140 = ssub.s32 %s16, 1
        // Predicated region
        $region13: #{tpu_custom_call.1} parent=11 // pred_check
          %p141 = pneg %p77
        $region14: #{tpu_custom_call.1} parent=11 // pred_check_branch
          %143 = sbr.rel (%p141) target = $region16
        $region15: #{tpu_custom_call.1} parent=11 // pred_region
          %145 = vsyncadd [#allocation6], 0
          %s146 = sshll.u32 %s1, 4
          %s147 = int_to_ptr.hbm [resolvable:$true] %s146
          %s148 = sshll.u32 [#allocation5], 4
          %s149 = int_to_ptr.vmem [resolvable:$true] %s148
          %154 = dma.hbm_to_vmem [thread:$0]  %s147, 256, %s149, [#allocation6], 64, 64, 4
        $region16: #{tpu_custom_call.1} parent=11 // pred_fallthru
          _
        // Predicated region
        $region17: #{tpu_custom_call.1} parent=11 // pred_check
          %p155 = pneg %p98
        $region18: #{tpu_custom_call.1} parent=11 // pred_check_branch
          %157 = sbr.rel (%p155) target = $region20
        $region19: #{tpu_custom_call.1} parent=11 // pred_region
          _
        $region20: #{tpu_custom_call.1} parent=11 // pred_fallthru
          _
      $region12: #{tpu_custom_call.1} parent=5 // pred_fallthru
        _
      %p158 = scmp.lt.s32.totalorder %s16, 2
      // Predicated region
      $region21: #{tpu_custom_call.1} parent=5 // pred_check
        %p159 = pneg %p158
      $region22: #{tpu_custom_call.1} parent=5 // pred_check_branch
        %161 = sbr.rel (%p159) target = $region24
      $region23: #{tpu_custom_call.1} parent=5 // pred_region
        // Predicated region
        $region25: #{tpu_custom_call.1} parent=23 // pred_check
          %p162 = pneg %p50
        $region26: #{tpu_custom_call.1} parent=23 // pred_check_branch
          %164 = sbr.rel (%p162) target = $region28
        $region27: #{tpu_custom_call.1} parent=23 // pred_region
          %s165 = sand.u32 %s40, 1
          %s166 = scalar_lea.sflag [#allocation3], %s165
          %s167 = sand.u32 %s40, 1
          %s168 = smul.addr %s167, 8
          %s169 = scalar_lea.vmem [#allocation2], %s168
          %171 = vsyncadd %s166, 0
          %s172 = sadd.s32 %s24, %s23
          %s173 = smul.addr %s172, 8
          %s174 = scalar_lea.hbm %s0, %s173
          %s176 = sshll.u32 %s174, 4
          %s177 = int_to_ptr.hbm [resolvable:$true] %s176
          %s178 = sshll.u32 %s169, 4
          %s179 = int_to_ptr.vmem [resolvable:$true] %s178
          %181 = dma.hbm_to_vmem [thread:$0]  %s177, 128, %s179, %s166
        $region28: #{tpu_custom_call.1} parent=23 // pred_fallthru
          _
      $region24: #{tpu_custom_call.1} parent=5 // pred_fallthru
        _
      %p182 = scmp.le.s32.totalorder 1, %s16
      %p183 = scmp.lt.s32.totalorder %s16, 3
      %p184 = pnand %p182, %p183
      %p185 = pneg %p184
      // Predicated region
      $region29: #{tpu_custom_call.1} parent=5 // pred_check
        _
      $region30: #{tpu_custom_call.1} parent=5 // pred_check_branch
        %187 = sbr.rel (%p184) target = $region32
      $region31: #{tpu_custom_call.1} parent=5 // pred_region
        %s188 = ssub.s32 %s16, 1
        %s189 = sand.u32 %s43, 1
        %s190 = scalar_lea.sflag [#allocation3], %s189
        %s191 = sand.u32 %s43, 1
        %s192 = smul.addr %s191, 8
        %s193 = scalar_lea.vmem [#allocation2], %s192
        // Predicated region
        $region33: #{tpu_custom_call.1} parent=31 // pred_check
          %p194 = pneg %p56
        $region34: #{tpu_custom_call.1} parent=31 // pred_check_branch
          %196 = sbr.rel (%p194) target = $region36
        $region35: #{tpu_custom_call.1} parent=31 // pred_region
          %198 = dma.done %s190, 128
        $region36: #{tpu_custom_call.1} parent=31 // pred_fallthru
          _
        // Predicated region
        $region37: #{tpu_custom_call.1} parent=31 // pred_check
          %p199 = pneg %p77
        $region38: #{tpu_custom_call.1} parent=31 // pred_check_branch
          %201 = sbr.rel (%p199) target = $region40
        $region39: #{tpu_custom_call.1} parent=31 // pred_region
          %203 = dma.done [#allocation6], 256
        $region40: #{tpu_custom_call.1} parent=31 // pred_fallthru
          _
        %s204 = sand.u32 %s43, 1
        %s205 = scalar_lea.sflag [#allocation3], %s204
        %s206 = sand.u32 %s43, 1
        %s207 = smul.addr %s206, 8
        %s208 = scalar_lea.vmem [#allocation2], %s207
        %p209 = pneg %p56
        %p210 = pneg %p53
        %p211 = pneg %p77
        %p212 = pneg %p74
        %p213 = pneg %p98
        %p214 = pneg %p95
        %p215 = pneg %p126
        %p216 = pneg %p123
        %s217 = sand.u32 %s113, 1
        %s218 = scalar_lea.sflag [#allocation4], %s217
        %s219 = sand.u32 %s113, 1
        %s220 = smul.addr %s219, 4
        %s221 = scalar_lea.vmem [#allocation7], %s220
        %v223 = vld [vmem:[%s193] sm:$0xff]
        %v224 = vpack.c.bf16 %v223, %v223
        %v225 = vld [vmem:[#allocation5] sm:$0xf]
        %v226 = vld [vmem:[#allocation5 + $0x4] sm:$0xf]
        %v227 = vld [vmem:[#allocation5 + $0x8] sm:$0xf]
        %v228 = vld [vmem:[#allocation5 + $0xc] sm:$0xf]
        %v229 = vld [vmem:[%s2] sm:$0x1]
        %v231 = vperm.slane %v229, 0
        %v237 = vunpack.c.l.b16 %v225
        %v238 = vunpack.c.l.b16 %v226
        %v239 = vunpack.c.l.b16 %v227
        %v240 = vunpack.c.l.b16 %v228
        %v241 = vpack.c.b16 %v238, %v237
        %v242 = vpack.c.b16 %v240, %v239
        %vm245 = vcmask 261120
        %v247 = vsel %vm245, %v224, 0
        %249 = vmatpush.bf16.msra.mxu0 0
        %250 = vmatpush.bf16.msra.mxu0 0
        %251 = vmatpush.bf16.msra.mxu0 0
        %252 = vmatpush.bf16.msra.mxu0 0
        %253 = vmatpush.bf16.msra.mxu0 0
        %254 = vmatpush.bf16.msra.mxu0 0
        %255 = vmatpush.bf16.msra.mxu0 %v242
        %256 = vmatpush.bf16.msra.mxu0 %v241
        %257 = vmatmul.bf16.gmra.mxu0 %v247
        %v258 = vpop.f32.mrf.mxu0
        %v259 = vadd.f32 %v231, %v258
        %v260 = vpop.f32.mrf.mxu0
        %261 = vdwg.mxu0
        %v262 = vpack.c.bf16 %v259, %v259
        %263 = vst [vmem:[%s221] sm:$0xf] %v262
        %s264 = sand.u32 %s113, 1
        %s265 = scalar_lea.sflag [#allocation4], %s264
        %s266 = sand.u32 %s113, 1
        %s267 = smul.addr %s266, 4
        %s268 = scalar_lea.vmem [#allocation7], %s267
        // Predicated region
        $region41: #{tpu_custom_call.1} parent=31 // pred_check
          %p269 = pneg %p123
        $region42: #{tpu_custom_call.1} parent=31 // pred_check_branch
          %271 = sbr.rel (%p269) target = $region44
        $region43: #{tpu_custom_call.1} parent=31 // pred_region
          %273 = vsyncadd %s265, 0
          %s274 = sadd.s32 %s26, %s25
          %s275 = smul.addr %s274, 4
          %s276 = scalar_lea.hbm %s3, %s275
          %s278 = sshll.u32 %s268, 4
          %s279 = int_to_ptr.vmem [resolvable:$true] %s278
          %s280 = sshll.u32 %s276, 4
          %s281 = int_to_ptr.hbm [resolvable:$true] %s280
          %283 = dma.vmem_to_hbm [thread:$0]  %s279, 64, %s281, %s265
        $region44: #{tpu_custom_call.1} parent=31 // pred_fallthru
          _
      $region32: #{tpu_custom_call.1} parent=5 // pred_fallthru
        _
      %p284 = scmp.le.s32.totalorder 2, %s16
      // Predicated region
      $region45: #{tpu_custom_call.1} parent=5 // pred_check
        %p285 = pneg %p284
      $region46: #{tpu_custom_call.1} parent=5 // pred_check_branch
        %287 = sbr.rel (%p285) target = $region48
      $region47: #{tpu_custom_call.1} parent=5 // pred_region
        %s288 = ssub.s32 %s16, 2
        // Predicated region
        $region49: #{tpu_custom_call.1} parent=47 // pred_check
          %p289 = pneg %p129
        $region50: #{tpu_custom_call.1} parent=47 // pred_check_branch
          %291 = sbr.rel (%p289) target = $region52
        $region51: #{tpu_custom_call.1} parent=47 // pred_region
          %s292 = sand.u32 %s114, 1
          %s293 = scalar_lea.sflag [#allocation4], %s292
          %s294 = sand.u32 %s114, 1
          %s295 = smul.addr %s294, 4
          %s296 = scalar_lea.vmem [#allocation7], %s295
          %298 = dma.done %s293, 64
        $region52: #{tpu_custom_call.1} parent=47 // pred_fallthru
          _
      $region48: #{tpu_custom_call.1} parent=5 // pred_fallthru
        _
    $region6: #{tpu_custom_call.1} parent=1 // loop_footer
      %s20 = sadd.s32 1, %s16
    $region7: #{tpu_custom_call.1} parent=1 // loop_footer_branch
      %15 = sbr.rel target = $region3
    $region8: #{tpu_custom_call.1} parent=1 // loop_exit
      _
    %299 = vsyncpa [#allocation3], 1
    %s300 = scalar_lea.sflag [#allocation3], 1
    %301 = vsyncpa %s300, 1
    %302 = vsyncpa [#allocation6], 1
    %303 = vsyncpa [#allocation4], 1
    %s304 = scalar_lea.sflag [#allocation4], 1
    %305 = vsyncpa %s304, 1

</llo_original>
